<compile_context>
chip_gen: v6e
topology: v6e:2x2x1
jax: 0.10.0
libtpu: 0.0.40
codegen_flags: <defaults>
</compile_context>

<pallas_src>
import functools
import math

import jax
import jax.numpy as jnp
from jax.experimental import pallas as pl
from jax.experimental.pallas import tpu as pltpu

MAX_EXPERT = 0      # self.max_expert in the PyTorch module
TARGET_VALUE = 64   # hard-coded target_value in forward()


def _round_up(x, m):
    return ((x + m - 1) // m) * m


def _moe_gate_kernel(x_ref, w_ref, rand_ref, idx_ref, wgt_ref, *,
                     top_k, norm_topk_prob, routed_scaling_factor):
    # --- gating linear (float32, like F.linear(x.float(), w.float())) ---
    x = x_ref[...].astype(jnp.float32)            # (T_BLK, H)
    w = w_ref[...].astype(jnp.float32)            # (E, H)
    # logits laid out (E, T_BLK): experts on sublanes, tokens on lanes.
    logits = jax.lax.dot_general(
        w, x,
        dimension_numbers=(((1,), (1,)), ((), ())),
        preferred_element_type=jnp.float32)       # (E, T_BLK)

    # --- softmax over experts (axis 0) ---
    m = jnp.max(logits, axis=0, keepdims=True)
    e = jnp.exp(logits - m)
    scores = e / jnp.sum(e, axis=0, keepdims=True)           # (E, T_BLK) f32

    E, T = scores.shape
    row = jax.lax.broadcasted_iota(jnp.int32, (E, T), 0)

    # --- greedy top-k via iterative argmax (k small & static) ---
    work = scores
    vals, idxs = [], []
    for _ in range(top_k):
        vmax = jnp.max(work, axis=0, keepdims=True)                      # (1,T)
        amax = jnp.min(jnp.where(work == vmax, row, E), axis=0,
                       keepdims=True)                                    # (1,T)
        vals.append(vmax)
        idxs.append(amax)
        # softmax scores are >= 0, so -1.0 safely removes the chosen expert
        work = jnp.where(row == amax, -1.0, work)

    topk_w = jnp.concatenate(vals, axis=0)   # (k, T_BLK) f32
    topk_i = jnp.concatenate(idxs, axis=0)   # (k, T_BLK) i32

    # --- top-k weight normalization / scaling ---
    if top_k > 1 and norm_topk_prob:
        denom = jnp.sum(topk_w, axis=0, keepdims=True) + 1e-20
        topk_w = topk_w / denom
    else:
        topk_w = topk_w * routed_scaling_factor

    # --- duplicate-expert random replacement ---
    # Any selection equal to max_expert (0) or target_value (64) is replaced
    # by a uniformly random choice between the two (fair coin from wrapper).
    choice = rand_ref[...]                                   # (k, T_BLK) i32 in {0,1}
    repl = jnp.where(choice == 0, jnp.int32(MAX_EXPERT), jnp.int32(TARGET_VALUE))
    dup_mask = (topk_i == MAX_EXPERT) | (topk_i == TARGET_VALUE)
    topk_i = jnp.where(dup_mask, repl, topk_i)

    idx_ref[...] = topk_i
    wgt_ref[...] = topk_w


def duplicate_moe_gate(hidden_states, weight, key, *, top_k,
                       norm_topk_prob, routed_scaling_factor,
                       t_blk_max=2048):
    """hidden_states: (bsz, seq, h); weight: (n_routed_experts, h)."""
    bsz, seq_len, h = hidden_states.shape
    n_experts = weight.shape[0]
    tokens = bsz * seq_len

    # Token tiling: lane-dense blocks (multiple of 128), capped at t_blk_max.
    t_blk = min(t_blk_max, _round_up(tokens, 128))
    t_pad = _round_up(tokens, t_blk)

    x = hidden_states.reshape(tokens, h)
    if t_pad != tokens:
        x = jnp.pad(x, ((0, t_pad - tokens), (0, 0)))

    # Fair-coin choices for the duplicate-expert replacement, one per (slot, token),
    # laid out (top_k, T) to match the kernel's lane-dense output layout.
    rand_choice = jax.random.randint(key, (top_k, t_pad), 0, 2, dtype=jnp.int32)

    kernel = functools.partial(
        _moe_gate_kernel,
        top_k=top_k,
        norm_topk_prob=norm_topk_prob,
        routed_scaling_factor=routed_scaling_factor,
    )

    idx_t, wgt_t = pl.pallas_call(
        kernel,
        out_shape=(
            jax.ShapeDtypeStruct((top_k, t_pad), jnp.int32),
            jax.ShapeDtypeStruct((top_k, t_pad), jnp.float32),
        ),
        grid_spec=pltpu.PrefetchScalarGridSpec(
            num_scalar_prefetch=0,
            grid=(t_pad // t_blk,),
            in_specs=[
                pl.BlockSpec((t_blk, h), lambda i: (i, 0)),          # x block
                pl.BlockSpec((n_experts, h), lambda i: (0, 0)),      # gate weight
                pl.BlockSpec((top_k, t_blk), lambda i: (0, i)),      # coin flips
            ],
            out_specs=[
                pl.BlockSpec((top_k, t_blk), lambda i: (0, i)),
                pl.BlockSpec((top_k, t_blk), lambda i: (0, i)),
            ],
        ),
        compiler_params=pltpu.CompilerParams(
            dimension_semantics=("parallel",)),
    )(x, weight, rand_choice)

    topk_idx = jnp.transpose(idx_t)[:tokens]      # (tokens, top_k)
    topk_weight = jnp.transpose(wgt_t)[:tokens]   # (tokens, top_k)

    # aux_loss: alpha == 0.0 (or eval mode) => None, matching the reference.
    # TODO(synk): training-time aux_loss (seq_aux scatter_add path) not ported.
    return topk_idx, topk_weight, None


if __name__ == "__main__":
    # Small deterministic config
    bsz, seq_len, hidden_size = 2, 8, 32
    n_routed_experts = 8
    top_k = 2
    norm_topk_prob = True
    routed_scaling_factor = 1.0

    key = jax.random.PRNGKey(0)
    k_x, k_w, k_rand = jax.random.split(key, 3)

    hidden_states = jax.random.normal(
        k_x, (bsz, seq_len, hidden_size), dtype=jnp.float32)

    # Deterministic kaiming_uniform_(a=sqrt(5)) init:
    #   bound = sqrt(6 / ((1 + a^2) * fan_in)) = 1 / sqrt(fan_in)
    fan_in = hidden_size
    bound = 1.0 / math.sqrt(fan_in)
    weight = jax.random.uniform(
        k_w, (n_routed_experts, hidden_size),
        minval=-bound, maxval=bound, dtype=jnp.float32)

    topk_idx, topk_weight, aux_loss = duplicate_moe_gate(
        hidden_states, weight, k_rand,
        top_k=top_k,
        norm_topk_prob=norm_topk_prob,
        routed_scaling_factor=routed_scaling_factor,
    )
    jax.block_until_ready((topk_idx, topk_weight))

    tokens = bsz * seq_len
    assert topk_idx.shape == (tokens, top_k)
    assert topk_weight.shape == (tokens, top_k)
    assert aux_loss is None

    # Light sanity checks: normalized weights sum to ~1; indices are either
    # valid experts or the hard-coded target_value=64 replacement.
    import numpy as np
    w_np = np.asarray(topk_weight)
    i_np = np.asarray(topk_idx)
    assert np.allclose(w_np.sum(axis=-1), 1.0, atol=1e-5)
    valid = (((i_np >= 0) & (i_np < n_routed_experts)) | (i_np == TARGET_VALUE))
    assert bool(valid.all())

    print("KERNEL_OK")
</pallas_src>

<mosaic_0001>
module attributes {stable_mosaic.version = 11 : i64} {
  func.func @_moe_gate_kernel(%arg0: i32, %arg1: memref<128x32xf32, #tpu.memory_space<vmem>>, %arg2: memref<8x32xf32, #tpu.memory_space<vmem>>, %arg3: memref<2x128xi32, #tpu.memory_space<vmem>>, %arg4: memref<2x128xi32, #tpu.memory_space<vmem>>, %arg5: memref<2x128xf32, #tpu.memory_space<vmem>>) attributes {dimension_semantics = [#tpu.dimension_semantics<parallel>], iteration_bounds = array<i64: 1>, scalar_prefetch = 0 : i64, scratch_operands = 0 : i64, tpu.core_type = #tpu.core_type<tc>, window_params = [{transform_indices = @transform_0, window_bounds = array<i64: 128, 32>}, {pipeline_mode = #tpu.pipeline_mode<synchronous>, transform_indices = @transform_1, window_bounds = array<i64: 8, 32>}, {transform_indices = @transform_2, window_bounds = array<i64: 2, 128>}, {transform_indices = @transform_3, window_bounds = array<i64: 2, 128>}, {transform_indices = @transform_4, window_bounds = array<i64: 2, 128>}]} {
    %c0 = arith.constant 0 : index
    %c0_0 = arith.constant 0 : index
    %0 = vector.load %arg1[%c0, %c0_0] : memref<128x32xf32, #tpu.memory_space<vmem>>, vector<128x32xf32>
    %c0_1 = arith.constant 0 : index
    %c0_2 = arith.constant 0 : index
    %1 = vector.load %arg2[%c0_1, %c0_2] : memref<8x32xf32, #tpu.memory_space<vmem>>, vector<8x32xf32>
    %cst = arith.constant dense<0.000000e+00> : vector<8x128xf32>
    %2 = tpu.matmul %1, %0, %cst {dimension_numbers = #tpu.dot_dimension_numbers<[1], [1], [0], [0], [0, 0, 1, 0], [], []>} : vector<8x32xf32>, vector<128x32xf32>, vector<8x128xf32> -> vector<8x128xf32>
    %cst_3 = arith.constant dense<0xFF800000> : vector<128xf32>
    %3 = vector.multi_reduction <maximumf>, %2, %cst_3 [0] : vector<8x128xf32> to vector<128xf32>
    %4 = vector.shape_cast %3 : vector<128xf32> to vector<1x128xf32>
    %5 = vector.broadcast %4 : vector<1x128xf32> to vector<8x128xf32>
    %6 = arith.subf %2, %5 : vector<8x128xf32>
    %7 = math.exp %6 : vector<8x128xf32>
    %cst_4 = arith.constant dense<0.000000e+00> : vector<128xf32>
    %8 = vector.multi_reduction <add>, %7, %cst_4 [0] : vector<8x128xf32> to vector<128xf32>
    %9 = vector.shape_cast %8 : vector<128xf32> to vector<1x128xf32>
    %10 = vector.broadcast %9 : vector<1x128xf32> to vector<8x128xf32>
    %11 = arith.divf %7, %10 : vector<8x128xf32>
    %12 = tpu.iota {dimensions = array<i32: 0>} : vector<8x128xi32>
    %cst_5 = arith.constant dense<0xFF800000> : vector<128xf32>
    %13 = vector.multi_reduction <maximumf>, %11, %cst_5 [0] : vector<8x128xf32> to vector<128xf32>
    %14 = vector.shape_cast %13 : vector<128xf32> to vector<1x128xf32>
    %15 = vector.broadcast %14 : vector<1x128xf32> to vector<8x128xf32>
    %16 = arith.cmpf oeq, %11, %15 : vector<8x128xf32>
    %c8_i32 = arith.constant 8 : i32
    %17 = vector.broadcast %c8_i32 : i32 to vector<8x128xi32>
    %18 = arith.select %16, %12, %17 : vector<8x128xi1>, vector<8x128xi32>
    %cst_6 = arith.constant dense<2147483647> : vector<128xi32>
    %19 = vector.multi_reduction <minsi>, %18, %cst_6 [0] : vector<8x128xi32> to vector<128xi32>
    %20 = vector.shape_cast %19 : vector<128xi32> to vector<1x128xi32>
    %21 = vector.broadcast %20 : vector<1x128xi32> to vector<8x128xi32>
    %22 = arith.cmpi eq, %12, %21 : vector<8x128xi32>
    %cst_7 = arith.constant -1.000000e+00 : f32
    %23 = vector.broadcast %cst_7 : f32 to vector<8x128xf32>
    %24 = arith.select %22, %23, %11 : vector<8x128xi1>, vector<8x128xf32>
    %cst_8 = arith.constant dense<0xFF800000> : vector<128xf32>
    %25 = vector.multi_reduction <maximumf>, %24, %cst_8 [0] : vector<8x128xf32> to vector<128xf32>
    %26 = vector.shape_cast %25 : vector<128xf32> to vector<1x128xf32>
    %27 = vector.broadcast %26 : vector<1x128xf32> to vector<8x128xf32>
    %28 = arith.cmpf oeq, %24, %27 : vector<8x128xf32>
    %c8_i32_9 = arith.constant 8 : i32
    %29 = vector.broadcast %c8_i32_9 : i32 to vector<8x128xi32>
    %30 = arith.select %28, %12, %29 : vector<8x128xi1>, vector<8x128xi32>
    %cst_10 = arith.constant dense<2147483647> : vector<128xi32>
    %31 = vector.multi_reduction <minsi>, %30, %cst_10 [0] : vector<8x128xi32> to vector<128xi32>
    %32 = vector.shape_cast %31 : vector<128xi32> to vector<1x128xi32>
    %33 = tpu.concatenate %14, %26 in 0 : vector<1x128xf32>, vector<1x128xf32> -> vector<2x128xf32>
    %34 = tpu.concatenate %20, %32 in 0 : vector<1x128xi32>, vector<1x128xi32> -> vector<2x128xi32>
    %cst_11 = arith.constant dense<0.000000e+00> : vector<128xf32>
    %35 = vector.multi_reduction <add>, %33, %cst_11 [0] : vector<2x128xf32> to vector<128xf32>
    %36 = vector.shape_cast %35 : vector<128xf32> to vector<1x128xf32>
    %cst_12 = arith.constant 9.99999968E-21 : f32
    %37 = vector.broadcast %cst_12 : f32 to vector<1x128xf32>
    %38 = arith.addf %36, %37 : vector<1x128xf32>
    %39 = vector.broadcast %38 : vector<1x128xf32> to vector<2x128xf32>
    %40 = arith.divf %33, %39 : vector<2x128xf32>
    %c0_13 = arith.constant 0 : index
    %c0_14 = arith.constant 0 : index
    %41 = vector.load %arg3[%c0_13, %c0_14] : memref<2x128xi32, #tpu.memory_space<vmem>>, vector<2x128xi32>
    %c0_i32 = arith.constant 0 : i32
    %42 = vector.broadcast %c0_i32 : i32 to vector<2x128xi32>
    %43 = arith.cmpi eq, %41, %42 : vector<2x128xi32>
    %c0_i32_15 = arith.constant 0 : i32
    %c64_i32 = arith.constant 64 : i32
    %44 = vector.broadcast %c0_i32_15 : i32 to vector<2x128xi32>
    %45 = vector.broadcast %c64_i32 : i32 to vector<2x128xi32>
    %46 = arith.select %43, %44, %45 : vector<2x128xi1>, vector<2x128xi32>
    %c0_i32_16 = arith.constant 0 : i32
    %47 = vector.broadcast %c0_i32_16 : i32 to vector<2x128xi32>
    %48 = arith.cmpi eq, %34, %47 : vector<2x128xi32>
    %c64_i32_17 = arith.constant 64 : i32
    %49 = vector.broadcast %c64_i32_17 : i32 to vector<2x128xi32>
    %50 = arith.cmpi eq, %34, %49 : vector<2x128xi32>
    %51 = arith.ori %48, %50 : vector<2x128xi1>
    %52 = arith.select %51, %46, %34 : vector<2x128xi1>, vector<2x128xi32>
    %c0_18 = arith.constant 0 : index
    %c0_19 = arith.constant 0 : index
    %53 = vector.load %arg4[%c0_18, %c0_19] : memref<2x128xi32, #tpu.memory_space<vmem>>, vector<2x128xi32>
    tpu.vector_store %arg4[%c0_18, %c0_19], %52 {strides = array<i32>} : memref<2x128xi32, #tpu.memory_space<vmem>>, vector<2x128xi32>,
    %c0_20 = arith.constant 0 : index
    %c0_21 = arith.constant 0 : index
    %54 = vector.load %arg5[%c0_20, %c0_21] : memref<2x128xf32, #tpu.memory_space<vmem>>, vector<2x128xf32>
    tpu.vector_store %arg5[%c0_20, %c0_21], %40 {strides = array<i32>} : memref<2x128xf32, #tpu.memory_space<vmem>>, vector<2x128xf32>,
    return
  }
  func.func @transform_0(%arg0: i32) -> (i32, i32) {
    %c0_i32 = arith.constant 0 : i32
    %c0_i32_0 = arith.constant 0 : i32
    return %arg0, %c0_i32 : i32, i32
  }
  func.func @transform_1(%arg0: i32) -> (i32, i32) {
    %c0_i32 = arith.constant 0 : i32
    %c0_i32_0 = arith.constant 0 : i32
    %c0_i32_1 = arith.constant 0 : i32
    return %c0_i32, %c0_i32_0 : i32, i32
  }
  func.func @transform_2(%arg0: i32) -> (i32, i32) {
    %c0_i32 = arith.constant 0 : i32
    %c0_i32_0 = arith.constant 0 : i32
    return %c0_i32, %arg0 : i32, i32
  }
  func.func @transform_3(%arg0: i32) -> (i32, i32) {
    %c0_i32 = arith.constant 0 : i32
    %c0_i32_0 = arith.constant 0 : i32
    return %c0_i32, %arg0 : i32, i32
  }
  func.func @transform_4(%arg0: i32) -> (i32, i32) {
    %c0_i32 = arith.constant 0 : i32
    %c0_i32_0 = arith.constant 0 : i32
    return %c0_i32, %arg0 : i32, i32
  }
}

</mosaic_0001>

<llo_original>
// kernel: tpu_custom_call.1
$region0: #{tpu_custom_call.1}
  #allocation0 [shape = 'u32[]', space=smem, size = 0x4, offset = 0x4, fixed_abs, tag = 'smem constant byte address 0x4 - core index']
  #allocation1 [shape = 'u32[144,128]{1,0:T(1,128)}', space=vmem, size = 0x12000, scoped, tag = 'internal scratch']
  %s0 = inlined_call_operand.vmem [shape: f32[128,32], index: 0, kind: input, shape index: {}]
  %s1 = inlined_call_operand.vmem [shape: f32[8,32], index: 1, kind: input, shape index: {}]
  %s2 = inlined_call_operand.vmem [shape: s32[2,128], index: 2, kind: input, shape index: {}]
  %s3 = inlined_call_operand.hbm [shape: s32[2,128], index: 3, kind: output, shape index: {0}]
  %s4 = inlined_call_operand.hbm [shape: f32[2,128], index: 4, kind: output, shape index: {1}]
  %5 = xla_tuple %s3, %s4
  %s6 = sld [smem:[#allocation0]]
  $region30: #{tpu_custom_call.1} parent=0
    _
  %s8 = ssub.s32 1, %s6
  %s9 = scalar_select 0, %s8, %s6
  $region1: #{tpu_custom_call.1} parent=0
    #allocation2 [shape = 'u8[1024]{0}', space=vmem, size = 0x400, scoped, tag = 'output window, operand 0, single buffered']
    #allocation3 [shape = 's32[1]{0}', space=sflag, size = 0x4, scoped, tag = 'scoped memory for tpu_custom_call.1']
    #allocation4 [shape = 'u8[1024]{0}', space=vmem, size = 0x400, scoped, tag = 'output window, operand 1, single buffered']
    #allocation5 [shape = 's32[1]{0}', space=sflag, size = 0x4, scoped, tag = 'scoped memory for tpu_custom_call.1']
    %10 = vsyncpa [#allocation3], 0
    %11 = vsyncpa [#allocation5], 0
    // Predicated region
    $region2: #{tpu_custom_call.1} parent=1 // pred_check
      _
    $region3: #{tpu_custom_call.1} parent=1 // pred_check_branch
      %13 = sbr.rel (0) target = $region5
    $region4: #{tpu_custom_call.1} parent=1 // pred_region
      _
    $region5: #{tpu_custom_call.1} parent=1 // pred_fallthru
      _
    // Predicated region
    $region6: #{tpu_custom_call.1} parent=1 // pred_check
      _
    $region7: #{tpu_custom_call.1} parent=1 // pred_check_branch
      %15 = sbr.rel (0) target = $region9
    $region8: #{tpu_custom_call.1} parent=1 // pred_region
      _
    $region9: #{tpu_custom_call.1} parent=1 // pred_fallthru
      _
    // Predicated region
    $region10: #{tpu_custom_call.1} parent=1 // pred_check
      _
    $region11: #{tpu_custom_call.1} parent=1 // pred_check_branch
      %17 = sbr.rel (0) target = $region13
    $region12: #{tpu_custom_call.1} parent=1 // pred_region
      _
    $region13: #{tpu_custom_call.1} parent=1 // pred_fallthru
      _
    %v18 = vld [vmem:[%s0] sm:$0xff]
    %v19 = vld [vmem:[%s0 + $0x8] sm:$0xff]
    %v20 = vld [vmem:[%s0 + $0x10] sm:$0xff]
    %v21 = vld [vmem:[%s0 + $0x18] sm:$0xff]
    %v22 = vld [vmem:[%s0 + $0x20] sm:$0xff]
    %v23 = vld [vmem:[%s0 + $0x28] sm:$0xff]
    %v24 = vld [vmem:[%s0 + $0x30] sm:$0xff]
    %v25 = vld [vmem:[%s0 + $0x38] sm:$0xff]
    %v26 = vld [vmem:[%s0 + $0x40] sm:$0xff]
    %v27 = vld [vmem:[%s0 + $0x48] sm:$0xff]
    %v28 = vld [vmem:[%s0 + $0x50] sm:$0xff]
    %v29 = vld [vmem:[%s0 + $0x58] sm:$0xff]
    %v30 = vld [vmem:[%s0 + $0x60] sm:$0xff]
    %v31 = vld [vmem:[%s0 + $0x68] sm:$0xff]
    %v32 = vld [vmem:[%s0 + $0x70] sm:$0xff]
    %v33 = vld [vmem:[%s0 + $0x78] sm:$0xff]
    %v34 = vld [vmem:[%s1] sm:$0xff]
    %vm35 = vcmask 261120
    %v37 = vsel %vm35, %v34, 0
    %v40 = vsel %vm35, %v18, 0
    %v43 = vsel %vm35, %v19, 0
    %v46 = vsel %vm35, %v20, 0
    %v49 = vsel %vm35, %v21, 0
    %v52 = vsel %vm35, %v22, 0
    %v55 = vsel %vm35, %v23, 0
    %v58 = vsel %vm35, %v24, 0
    %v61 = vsel %vm35, %v25, 0
    %v64 = vsel %vm35, %v26, 0
    %v67 = vsel %vm35, %v27, 0
    %v70 = vsel %vm35, %v28, 0
    %v73 = vsel %vm35, %v29, 0
    %v76 = vsel %vm35, %v30, 0
    %v79 = vsel %vm35, %v31, 0
    %v82 = vsel %vm35, %v32, 0
    %v85 = vsel %vm35, %v33, 0
    %87 = vmatprep.subr.mxu0 0.0
    %88 = vmatpush1.xpose.msra.mxu0 %v85
    %89 = vmatprep.subr.mxu0 0.0
    %90 = vmatpush1.xpose.msra.mxu0 %v82
    %91 = vmatprep.subr.mxu0 0.0
    %92 = vmatpush1.xpose.msra.mxu0 %v79
    %93 = vmatprep.subr.mxu0 0.0
    %94 = vmatpush1.xpose.msra.mxu0 %v76
    %95 = vmatprep.subr.mxu0 0.0
    %96 = vmatpush1.xpose.msra.mxu0 %v73
    %97 = vmatprep.subr.mxu0 0.0
    %98 = vmatpush1.xpose.msra.mxu0 %v70
    %99 = vmatprep.subr.mxu0 0.0
    %100 = vmatpush1.xpose.msra.mxu0 %v67
    %101 = vmatprep.subr.mxu0 0.0
    %102 = vmatpush1.xpose.msra.mxu0 %v64
    %103 = vmatprep.subr.mxu0 0.0
    %104 = vmatpush1.xpose.msra.mxu0 %v61
    %105 = vmatprep.subr.mxu0 0.0
    %106 = vmatpush1.xpose.msra.mxu0 %v58
    %107 = vmatprep.subr.mxu0 0.0
    %108 = vmatpush1.xpose.msra.mxu0 %v55
    %109 = vmatprep.subr.mxu0 0.0
    %110 = vmatpush1.xpose.msra.mxu0 %v52
    %111 = vmatprep.subr.mxu0 0.0
    %112 = vmatpush1.xpose.msra.mxu0 %v49
    %113 = vmatprep.subr.mxu0 0.0
    %114 = vmatpush1.xpose.msra.mxu0 %v46
    %115 = vmatprep.subr.mxu0 0.0
    %116 = vmatpush1.xpose.msra.mxu0 %v43
    %117 = vmatprep.subr.mxu0 0.0
    %118 = vmatpush1.xpose.msra.mxu0 %v40
    %119 = vmatprep.subr.mxu0 0.0
    %120 = vmatpush2.xpose.msra.mxu0 0.0
    %121 = vmatprep.subr.mxu0 0.0
    %122 = vmatpush2.xpose.msra.mxu0 0.0
    %123 = vmatprep.subr.mxu0 0.0
    %124 = vmatpush2.xpose.msra.mxu0 0.0
    %125 = vmatprep.subr.mxu0 0.0
    %126 = vmatpush2.xpose.msra.mxu0 0.0
    %127 = vmatprep.subr.mxu0 0.0
    %128 = vmatpush2.xpose.msra.mxu0 0.0
    %129 = vmatprep.subr.mxu0 0.0
    %130 = vmatpush2.xpose.msra.mxu0 0.0
    %131 = vmatprep.subr.mxu0 0.0
    %132 = vmatpush2.xpose.msra.mxu0 0.0
    %133 = vmatprep.subr.mxu0 0.0
    %134 = vmatpush2.xpose.msra.mxu0 0.0
    %135 = vmatprep.subr.mxu0 0.0
    %136 = vmatpush2.xpose.msra.mxu0 0.0
    %137 = vmatprep.subr.mxu0 0.0
    %138 = vmatpush2.xpose.msra.mxu0 0.0
    %139 = vmatprep.subr.mxu0 0.0
    %140 = vmatpush2.xpose.msra.mxu0 0.0
    %141 = vmatprep.subr.mxu0 0.0
    %142 = vmatpush2.xpose.msra.mxu0 0.0
    %143 = vmatprep.subr.mxu0 0.0
    %144 = vmatpush2.xpose.msra.mxu0 0.0
    %145 = vmatprep.subr.mxu0 0.0
    %146 = vmatpush2.xpose.msra.mxu0 0.0
    %147 = vmatprep.subr.mxu0 0.0
    %148 = vmatpush2.xpose.msra.mxu0 0.0
    %149 = vmatprep.subr.mxu0 0.0
    %150 = vmatpush2.xpose.msra.mxu0 0.0
    %151 = vmatprep.mubr.f32.mxu0 0.0
    %152 = vmatmul.mubr.f32.gmra.mxu0 %v37
    %v153 = vpop.f32.mrf.mxu0
    %v154 = vadd.f32 0.0, %v153
    %v155 = vpop.f32.mrf.mxu0
    %156 = vdwg.mxu0
    %v157 = vrot.slane %v154, 4
    %v158 = vmax.f32 %v154, %v157
    %v159 = vrot.slane %v158, 2
    %v160 = vmax.f32 %v158, %v159
    %v161 = vrot.slane %v160, 1
    %v162 = vmax.f32 %v160, %v161
    %v163 = vsub.f32 %v154, %v162
    %v164 = vmul.f32 %v163, 1.442695
    %v165 = vpow.pop %v164
    %v166 = vrot.slane %v165, 4
    %v167 = vadd.f32 %v165, %v166
    %v168 = vrot.slane %v167, 2
    %v169 = vadd.f32 %v167, %v168
    %v170 = vrot.slane %v169, 1
    %v171 = vadd.f32 %v169, %v170
    %v172 = vrcp.pop %v171
    %v173 = vmul.f32 %v165, %v172
    %v174 = vlaneseq
    %v175 = vshrl.u32 %v174, 7
    %v176 = vrot.slane %v173, 4
    %v177 = vmax.f32 %v173, %v176
    %v178 = vrot.slane %v177, 2
    %v179 = vmax.f32 %v177, %v178
    %v180 = vrot.slane %v179, 1
    %v181 = vmax.f32 %v179, %v180
    %vm182 = vcmp.eq.f32.partialorder %v173, %v181
    %v183 = vsel %vm182, %v175, 8
    %v184 = vrot.slane %v183, 4
    %vm185 = vcmp.lt.s32.totalorder %v183, %v184
    %v186 = vsel %vm185, %v183, %v184
    %v187 = vrot.slane %v186, 2
    %vm188 = vcmp.lt.s32.totalorder %v186, %v187
    %v189 = vsel %vm188, %v186, %v187
    %v190 = vrot.slane %v189, 1
    %vm191 = vcmp.lt.s32.totalorder %v189, %v190
    %v192 = vsel %vm191, %v189, %v190
    %vm193 = vcmp.eq.s32.totalorder %v175, %v192
    %v194 = vsel %vm193, -1.0, %v173
    %v195 = vrot.slane %v194, 4
    %v196 = vmax.f32 %v194, %v195
    %v197 = vrot.slane %v196, 2
    %v198 = vmax.f32 %v196, %v197
    %v199 = vrot.slane %v198, 1
    %v200 = vmax.f32 %v198, %v199
    %vm201 = vcmp.eq.f32.partialorder %v194, %v200
    %v202 = vsel %vm201, %v175, 8
    %v203 = vrot.slane %v202, 4
    %vm204 = vcmp.lt.s32.totalorder %v202, %v203
    %v205 = vsel %vm204, %v202, %v203
    %v206 = vrot.slane %v205, 2
    %vm207 = vcmp.lt.s32.totalorder %v205, %v206
    %v208 = vsel %vm207, %v205, %v206
    %v209 = vrot.slane %v208, 1
    %vm210 = vcmp.lt.s32.totalorder %v208, %v209
    %v211 = vsel %vm210, %v208, %v209
    %vm212 = vcmask 1040384
    %v213 = vsel %vm212, %v181, %v200
    %v214 = vsel %vm212, %v192, %v211
    %vm215 = vcmask 1041408
    %v216 = vsel %vm215, %v213, 0.0
    %v217 = vrot.slane %v216, 4
    %v218 = vadd.f32 %v216, %v217
    %v219 = vrot.slane %v218, 2
    %v220 = vadd.f32 %v218, %v219
    %v221 = vrot.slane %v220, 1
    %v222 = vadd.f32 %v220, %v221
    %v223 = vadd.f32 %v222, 1e-20
    %v224 = vrcp.pop %v223
    %v225 = vmul.f32 %v213, %v224
    %v226 = vld [vmem:[%s2] sm:$0x3]
    %vm227 = vcmp.eq.s32.totalorder %v226, 0
    %v228 = vsel %vm227, 0, 64
    %vm229 = vcmp.eq.s32.totalorder %v214, 0
    %vm230 = vcmp.eq.s32.totalorder %v214, 64
    %vm231 = vmor %vm229, %vm230
    %v232 = vsel %vm231, %v228, %v214
    %233 = vst [vmem:[#allocation2] sm:$0x3] %v232
    %234 = vst [vmem:[#allocation4] sm:$0x3] %v225
    // Predicated region
    $region14: #{tpu_custom_call.1} parent=1 // pred_check
      _
    $region15: #{tpu_custom_call.1} parent=1 // pred_check_branch
      %236 = sbr.rel (0) target = $region17
    $region16: #{tpu_custom_call.1} parent=1 // pred_region
      %s238 = ssub.s32 32, 32
      %239 = vsyncadd [#allocation3], %s238
      %s241 = sshll.u32 [#allocation2], 4
      %s242 = int_to_ptr.vmem [resolvable:$true] %s241
      %244 = dma.vmem_to_hbm [thread:$0]  %s242, 32, %s3, [#allocation3]
    $region17: #{tpu_custom_call.1} parent=1 // pred_fallthru
      _
    // Predicated region
    $region18: #{tpu_custom_call.1} parent=1 // pred_check
      _
    $region19: #{tpu_custom_call.1} parent=1 // pred_check_branch
      %246 = sbr.rel (0) target = $region21
    $region20: #{tpu_custom_call.1} parent=1 // pred_region
      %s248 = ssub.s32 32, 32
      %249 = vsyncadd [#allocation5], %s248
      %s251 = sshll.u32 [#allocation4], 4
      %s252 = int_to_ptr.vmem [resolvable:$true] %s251
      %254 = dma.vmem_to_hbm [thread:$0]  %s252, 32, %s4, [#allocation5]
    $region21: #{tpu_custom_call.1} parent=1 // pred_fallthru
      _
    // Predicated region
    $region22: #{tpu_custom_call.1} parent=1 // pred_check
      _
    $region23: #{tpu_custom_call.1} parent=1 // pred_check_branch
      %256 = sbr.rel (0) target = $region25
    $region24: #{tpu_custom_call.1} parent=1 // pred_region
      %257 = dma.done [#allocation3], 32
    $region25: #{tpu_custom_call.1} parent=1 // pred_fallthru
      _
    // Predicated region
    $region26: #{tpu_custom_call.1} parent=1 // pred_check
      _
    $region27: #{tpu_custom_call.1} parent=1 // pred_check_branch
      %259 = sbr.rel (0) target = $region29
    $region28: #{tpu_custom_call.1} parent=1 // pred_region
      %260 = dma.done [#allocation5], 32
    $region29: #{tpu_custom_call.1} parent=1 // pred_fallthru
      _
    %261 = vsyncpa [#allocation3], 1
    %262 = vsyncpa [#allocation5], 1

</llo_original>
